<compile_context>
chip_gen: v5e
topology: v5e:2x2
jax: 0.10.0
libtpu: 0.0.40
codegen_flags: <defaults>
</compile_context>

<pallas_src>
import functools

import jax
import jax.numpy as jnp
from jax import lax
from jax.experimental import pallas as pl
from jax.experimental.pallas import tpu as pltpu

LANES = 128


def _round_up(x, m):
    return (x + m - 1) // m * m


# ----------------------------------------------------------------------------
# Mish
# ----------------------------------------------------------------------------
def _mish_ref(x):
    """Exact Mish: x * tanh(softplus(x)) (pure-JAX reference)."""
    return x * jnp.tanh(jnp.logaddexp(x, 0.0))


def _mish_fast(x):
    """In-kernel Mish: tanh(softplus(x)) = w / (w + 2), w = e^x (e^x + 2).

    One EUP exp + one reciprocal instead of exp + log + tanh.  Clamped for
    large x where mish(x) == x to within f32 precision (avoids exp overflow).
    (pl.reciprocal(..., approx=True) would shave a little more EUP work at a
    ~1e-3-level accuracy cost.)
    """
    u = jnp.exp(jnp.minimum(x, 20.0))
    w = u * (u + 2.0)
    t = w * pl.reciprocal(w + 2.0)
    return jnp.where(x > 20.0, x, x * t)


# ----------------------------------------------------------------------------
# Tiny one-time probe: which pltpu.roll shift moves data toward higher row
# indices (out[j] == x[j-1])?  Makes the 3x3 tap construction robust to the
# roll direction convention.
# ----------------------------------------------------------------------------
@functools.lru_cache(maxsize=None)
def _roll_down_shift():
    def probe(x_ref, o_ref):
        o_ref[...] = pltpu.roll(x_ref[...], shift=1, axis=0)

    x = jnp.arange(8 * 128, dtype=jnp.float32).reshape(8, 128)
    y = pl.pallas_call(
        probe, out_shape=jax.ShapeDtypeStruct((8, 128), jnp.float32))(x)
    return 1 if bool(jnp.array_equal(y, jnp.roll(x, 1, axis=0))) else -1


# ----------------------------------------------------------------------------
# Pallas kernel: one residual block for one image.
#   x_ref  : (H*W, Cp) f32   flattened NHWC input (batch dim squeezed)
#   w1_ref : (Cp, Cp)  bf16  1x1 conv weight, (C_in, C_out)
#   s1/b1  : (1, Cp)   f32   folded BN scale / shift after conv1
#   w2_ref : (9, Cp, Cp) bf16  3x3 conv weight, tap-major (ky*3+kx), (C_in,C_out)
#   s2/b2  : (1, Cp)   f32   folded BN scale / shift after conv2
#   o_ref  : (H*W, Cp) f32   output
#   hpad_ref: ((H+2)*W, Cp) f32 scratch: conv1 output with one zero halo row
#             of W entries above and below (flattened).
# ----------------------------------------------------------------------------
def _resblock_kernel(H, W, TH, down, shortcut,
                     x_ref, w1_ref, s1_ref, b1_ref, w2_ref, s2_ref, b2_ref,
                     o_ref, hpad_ref):
    Cp = x_ref.shape[-1]
    NS = H // TH            # row strips per image
    M = TH * W              # flattened output rows per strip
    Mh = (TH + 2) * W       # conv2 input rows per strip (1 halo row per side)

    # Zero only the two halo rows of the scratch (2*W rows, tiny).  Done every
    # step so it stays correct even if the batch axis is split across cores.
    zrow = jnp.zeros((W, Cp), hpad_ref.dtype)
    hpad_ref[pl.ds(0, W), :] = zrow
    hpad_ref[pl.ds((H + 1) * W, W), :] = zrow

    w1 = w1_ref[...]                       # (Cp, Cp) bf16
    s1 = s1_ref[...]                       # (1, Cp)  f32
    b1 = b1_ref[...]
    s2 = s2_ref[...]
    b2 = b2_ref[...]

    # ---- Pass 1: 1x1 conv (channel matmul) + BN + Mish, strip by strip ----
    def conv1_strip(s, carry):
        r0 = pl.multiple_of(s * M, 8)
        xs = x_ref[pl.ds(r0, M), :]                               # (M, Cp) f32
        a = jnp.dot(xs.astype(jnp.bfloat16), w1,
                    preferred_element_type=jnp.float32)           # MXU, f32 acc
        h = _mish_fast(a * s1 + b1)
        hpad_ref[pl.ds(pl.multiple_of(W + s * M, 8), M), :] = h
        return carry

    lax.fori_loop(0, NS, conv1_strip, 0, unroll=True)

    # x-position of every flattened row; masks for the +/-1 column shifts.
    # (Hoisted out of the strip loop: broadcast_in_dim is not CSE'd by JAX.)
    xpos = lax.broadcasted_iota(jnp.int32, (Mh, Cp), 0) % W
    mask_l = xpos != 0                     # x-1 tap invalid at x == 0
    mask_r = xpos != (W - 1)               # x+1 tap invalid at x == W-1
    shift_l = down % Mh                    # roll producing out[j] = h[j-1]
    shift_r = (-down) % Mh                 # roll producing out[j] = h[j+1]

    # ---- Pass 2: 3x3 conv + BN + Mish + residual, strip by strip ----------
    def conv2_strip(s, carry):
        base = pl.multiple_of(s * M, 8)
        hs = hpad_ref[pl.ds(base, Mh), :]                         # (Mh, Cp) f32
        # dx = -1 / +1 column shifts as sublane rolls (XLU slot, idle while
        # the MXU is busy) + boundary mask -- replaces sublane-unaligned
        # slices of a zero-padded (H+2, W+2, C) buffer.
        h_l = jnp.where(mask_l, pltpu.roll(hs, shift=shift_l, axis=0), 0.0)
        h_r = jnp.where(mask_r, pltpu.roll(hs, shift=shift_r, axis=0), 0.0)

        acc = jnp.zeros((M, Cp), jnp.float32)
        for kx, hk in ((0, h_l), (1, hs), (2, h_r)):
            for ky in range(3):                                   # static taps
                tap = hk[ky * W:ky * W + M, :]        # sublane-aligned slice
                acc = acc + jnp.dot(tap.astype(jnp.bfloat16),
                                    w2_ref[ky * 3 + kx],
                                    preferred_element_type=jnp.float32)

        h2 = _mish_fast(acc * s2 + b2)
        xs = x_ref[pl.ds(base, M), :]
        out = xs + h2 if shortcut else h2
        o_ref[pl.ds(base, M), :] = out.astype(o_ref.dtype)
        return carry

    lax.fori_loop(0, NS, conv2_strip, 0, unroll=True)


def _resblock_pallas_one(x_flat, p, H, W, shortcut):
    """One residual block.  x_flat: (N, H*W, Cp) f32, returns same shape."""
    N, HW, Cp = x_flat.shape
    TH = 8 if H % 8 == 0 else H            # rows per strip
    down = _roll_down_shift()
    kernel = functools.partial(_resblock_kernel, H, W, TH, down, shortcut)

    def const_spec(shape):
        # Constant block index -> weights are fetched once, not per image.
        return pl.BlockSpec(shape, lambda n: (0,) * len(shape))

    return pl.pallas_call(
        kernel,
        out_shape=jax.ShapeDtypeStruct((N, HW, Cp), x_flat.dtype),
        grid_spec=pltpu.PrefetchScalarGridSpec(
            num_scalar_prefetch=0,
            grid=(N,),                                 # one image per step
            in_specs=[
                pl.BlockSpec((None, HW, Cp), lambda n: (n, 0, 0)),
                const_spec((Cp, Cp)),        # w1
                const_spec((1, Cp)),         # s1
                const_spec((1, Cp)),         # b1
                const_spec((9, Cp, Cp)),     # w2
                const_spec((1, Cp)),         # s2
                const_spec((1, Cp)),         # b2
            ],
            out_specs=pl.BlockSpec((None, HW, Cp), lambda n: (n, 0, 0)),
            scratch_shapes=[pltpu.VMEM(((H + 2) * W, Cp), jnp.float32)],
        ),
        compiler_params=pltpu.CompilerParams(
            dimension_semantics=("parallel",),
            vmem_limit_bytes=32 * 1024 * 1024,
        ),
    )(x_flat, p['w1'], p['s1'], p['b1'], p['w2'], p['s2'], p['b2'])


def resblock_forward(x_nchw, params, shortcut=True):
    """Full ResBlock forward.  Input/output in PyTorch NCHW layout."""
    N, C, H, W = x_nchw.shape
    assert W % 8 == 0, "W must be a multiple of 8 (sublane-aligned rows)"
    Cp = params[0]['w1'].shape[0]
    x = jnp.transpose(x_nchw, (0, 2, 3, 1))               # NCHW -> NHWC
    if Cp != C:
        x = jnp.pad(x, ((0, 0), (0, 0), (0, 0), (0, Cp - C)))
    x = x.reshape(N, H * W, Cp)                            # lane-dense 2-D view
    for p in params:
        x = _resblock_pallas_one(x, p, H, W, shortcut)
    x = x.reshape(N, H, W, Cp)[..., :C]
    return jnp.transpose(x, (0, 3, 1, 2))                  # NHWC -> NCHW


# ----------------------------------------------------------------------------
# Deterministic parameter init (shapes per the PyTorch module), eval-mode BN
# folded into per-channel scale/shift, channels padded to the lane width,
# conv weights stored in bf16 for the MXU.
# ----------------------------------------------------------------------------
def init_params(key, ch, nblocks):
    eps = 1e-5
    Cp = _round_up(ch, LANES)
    pc = Cp - ch
    params = []
    for i in range(nblocks):
        ks = jax.random.split(jax.random.fold_in(key, i), 10)
        # conv1: torch weight (C_out, C_in, 1, 1)
        w1_t = 0.1 * jax.random.normal(ks[0], (ch, ch, 1, 1), jnp.float32)
        g1 = 1.0 + 0.1 * jax.random.normal(ks[1], (ch,), jnp.float32)
        be1 = 0.1 * jax.random.normal(ks[2], (ch,), jnp.float32)
        rm1 = 0.1 * jax.random.normal(ks[3], (ch,), jnp.float32)
        rv1 = 1.0 + 0.1 * jax.random.uniform(ks[4], (ch,), jnp.float32)
        # conv2: torch weight (C_out, C_in, 3, 3)
        w2_t = 0.1 * jax.random.normal(ks[5], (ch, ch, 3, 3), jnp.float32)
        g2 = 1.0 + 0.1 * jax.random.normal(ks[6], (ch,), jnp.float32)
        be2 = 0.1 * jax.random.normal(ks[7], (ch,), jnp.float32)
        rm2 = 0.1 * jax.random.normal(ks[8], (ch,), jnp.float32)
        rv2 = 1.0 + 0.1 * jax.random.uniform(ks[9], (ch,), jnp.float32)

        # Fold eval-mode BN into per-channel scale/shift.
        s1 = g1 / jnp.sqrt(rv1 + eps)
        b1 = be1 - rm1 * s1
        s2 = g2 / jnp.sqrt(rv2 + eps)
        b2 = be2 - rm2 * s2

        # Re-layout for the NHWC kernel:
        #   w1: (C_out, C_in, 1, 1) -> (C_in, C_out)
        #   w2: (C_out, C_in, 3, 3) -> (ky, kx, C_in, C_out) -> (9, C_in, C_out)
        w1 = jnp.transpose(w1_t[:, :, 0, 0], (1, 0))
        w2 = jnp.transpose(w2_t, (2, 3, 1, 0)).reshape(9, ch, ch)

        params.append(dict(
            w1=jnp.pad(w1, ((0, pc), (0, pc))).astype(jnp.bfloat16),
            w2=jnp.pad(w2, ((0, 0), (0, pc), (0, pc))).astype(jnp.bfloat16),
            s1=jnp.pad(s1, (0, pc)).reshape(1, Cp),
            b1=jnp.pad(b1, (0, pc)).reshape(1, Cp),
            s2=jnp.pad(s2, (0, pc)).reshape(1, Cp),
            b2=jnp.pad(b2, (0, pc)).reshape(1, Cp),
        ))
    return params


# ----------------------------------------------------------------------------
# Pure-JAX (XLA conv) reference.  Uses the same bf16 matmul operands / f32
# accumulation as the kernel so the comparison isolates the kernel's logic
# (taps, shifts, masks, BN folding, residual) rather than bf16 rounding.
# ----------------------------------------------------------------------------
def ref_forward(x_nchw, params, shortcut=True):
    N, C, H, W = x_nchw.shape
    Cp = params[0]['w1'].shape[0]
    x = jnp.transpose(x_nchw, (0, 2, 3, 1))
    if Cp != C:
        x = jnp.pad(x, ((0, 0), (0, 0), (0, 0), (0, Cp - C)))
    for p in params:
        a = jnp.einsum('nhwc,cd->nhwd', x.astype(jnp.bfloat16), p['w1'],
                       preferred_element_type=jnp.float32)
        h = _mish_ref(a * p['s1'] + p['b1'])
        w2 = p['w2'].reshape(3, 3, Cp, Cp)                  # HWIO, bf16
        a2 = lax.conv_general_dilated(
            h.astype(jnp.bfloat16), w2, window_strides=(1, 1), padding='SAME',
            dimension_numbers=('NHWC', 'HWIO', 'NHWC'),
            preferred_element_type=jnp.float32)
        h2 = _mish_ref(a2 * p['s2'] + p['b2'])
        x = x + h2 if shortcut else h2
    x = x[..., :C]
    return jnp.transpose(x, (0, 3, 1, 2))


if __name__ == "__main__":
    key = jax.random.PRNGKey(0)
    k_x, k_p = jax.random.split(key)

    N, C, H, W = 2, 4, 16, 16
    nblocks = 2
    x = jax.random.normal(k_x, (N, C, H, W), jnp.float32)
    params = init_params(k_p, C, nblocks)

    out = jax.block_until_ready(resblock_forward(x, params, shortcut=True))
    ref = ref_forward(x, params, shortcut=True)

    assert out.shape == (N, C, H, W)
    # Remaining diffs vs. the reference come only from f32 accumulation order
    # and the algebraic Mish form -> tight tolerance.
    max_err = float(jnp.max(jnp.abs(out - ref)))
    assert jnp.allclose(out, ref, atol=2e-3, rtol=2e-3), max_err

    print("KERNEL_OK")
</pallas_src>

<mosaic_0001>
module attributes {stable_mosaic.version = 11 : i64} {
  func.func @probe(%arg0: memref<8x128xf32, #tpu.memory_space<vmem>>, %arg1: memref<8x128xf32, #tpu.memory_space<vmem>>) attributes {dimension_semantics = [], scalar_prefetch = 0 : i64, scratch_operands = 0 : i64, tpu.core_type = #tpu.core_type<tc>} {
    %c0 = arith.constant 0 : index
    %c0_0 = arith.constant 0 : index
    %0 = vector.load %arg0[%c0, %c0_0] : memref<8x128xf32, #tpu.memory_space<vmem>>, vector<8x128xf32>
    %c1_i32 = arith.constant 1 : i32
    %1 = tpu.dynamic_rotate %0 by %c1_i32 dim 0 : vector<8x128xf32>, i32 -> vector<8x128xf32>
    %c0_1 = arith.constant 0 : index
    %c0_2 = arith.constant 0 : index
    %2 = vector.load %arg1[%c0_1, %c0_2] : memref<8x128xf32, #tpu.memory_space<vmem>>, vector<8x128xf32>
    tpu.vector_store %arg1[%c0_1, %c0_2], %1 {strides = array<i32>} : memref<8x128xf32, #tpu.memory_space<vmem>>, vector<8x128xf32>,
    return
  }
}

</mosaic_0001>

<llo_original>
// kernel: tpu_custom_call.1
$region0: #{tpu_custom_call.1}
  #allocation0 [shape = 'u32[]', space=smem, size = 0x4, offset = 0x4, fixed_abs, tag = 'smem constant byte address 0x4 - core index']
  #allocation1 [shape = 'u32[72,128]{1,0:T(1,128)}', space=vmem, size = 0x9000, scoped, tag = 'internal scratch']
  %s0 = inlined_call_operand.hbm [shape: f32[8,128], index: 0, kind: input, shape index: {}]
  %s1 = inlined_call_operand.hbm [shape: f32[8,128], index: 1, kind: output, shape index: {}]
  %s2 = sld [smem:[#allocation0]]
  $region18: #{tpu_custom_call.1} parent=0
    _
  %s4 = ssub.s32 1, %s2
  %s5 = scalar_select 0, %s4, %s2
  $region1: #{tpu_custom_call.1} parent=0
    #allocation2 [shape = 'u8[4096]{0}', space=vmem, size = 0x1000, scoped, tag = 'input window, operand 0, single buffered']
    #allocation3 [shape = 's32[1]{0}', space=sflag, size = 0x4, scoped, tag = 'scoped memory for tpu_custom_call.1']
    #allocation4 [shape = 's32[1]{0}', space=sflag, size = 0x4, scoped, tag = 'scoped memory for tpu_custom_call.1']
    #allocation5 [shape = 'u8[4096]{0}', space=vmem, size = 0x1000, scoped, tag = 'output window, operand 0, single buffered']
    %6 = vsyncpa [#allocation3], 0
    %7 = vsyncpa [#allocation4], 0
    // Predicated region
    $region2: #{tpu_custom_call.1} parent=1 // pred_check
      _
    $region3: #{tpu_custom_call.1} parent=1 // pred_check_branch
      %9 = sbr.rel (0) target = $region5
    $region4: #{tpu_custom_call.1} parent=1 // pred_region
      %11 = vsyncadd [#allocation3], 0
      %s13 = sshll.u32 %s0, 4
      %s14 = int_to_ptr.hbm [resolvable:$true] %s13
      %s15 = sshll.u32 [#allocation2], 4
      %s16 = int_to_ptr.vmem [resolvable:$true] %s15
      %18 = dma.hbm_to_vmem [thread:$0]  %s14, 128, %s16, [#allocation3]
    $region5: #{tpu_custom_call.1} parent=1 // pred_fallthru
      _
    // Predicated region
    $region6: #{tpu_custom_call.1} parent=1 // pred_check
      _
    $region7: #{tpu_custom_call.1} parent=1 // pred_check_branch
      %20 = sbr.rel (0) target = $region9
    $region8: #{tpu_custom_call.1} parent=1 // pred_region
      %22 = dma.done [#allocation3], 128
    $region9: #{tpu_custom_call.1} parent=1 // pred_fallthru
      _
    %v23 = vld [vmem:[#allocation2] sm:$0xff]
    %v24 = vrot.slane %v23, 7
    %25 = vst [vmem:[#allocation5] sm:$0xff] %v24
    // Predicated region
    $region10: #{tpu_custom_call.1} parent=1 // pred_check
      _
    $region11: #{tpu_custom_call.1} parent=1 // pred_check_branch
      %27 = sbr.rel (0) target = $region13
    $region12: #{tpu_custom_call.1} parent=1 // pred_region
      %29 = vsyncadd [#allocation4], 0
      %s31 = sshll.u32 [#allocation5], 4
      %s32 = int_to_ptr.vmem [resolvable:$true] %s31
      %s33 = sshll.u32 %s1, 4
      %s34 = int_to_ptr.hbm [resolvable:$true] %s33
      %36 = dma.vmem_to_hbm [thread:$0]  %s32, 128, %s34, [#allocation4]
    $region13: #{tpu_custom_call.1} parent=1 // pred_fallthru
      _
    // Predicated region
    $region14: #{tpu_custom_call.1} parent=1 // pred_check
      _
    $region15: #{tpu_custom_call.1} parent=1 // pred_check_branch
      %38 = sbr.rel (0) target = $region17
    $region16: #{tpu_custom_call.1} parent=1 // pred_region
      %40 = dma.done [#allocation4], 128
    $region17: #{tpu_custom_call.1} parent=1 // pred_fallthru
      _
    %41 = vsyncpa [#allocation3], 1
    %42 = vsyncpa [#allocation4], 1

</llo_original>
